<compile_context>
chip_gen: v7x
topology: tpu7x:2x2x1
jax: 0.10.0
libtpu: 0.0.40
codegen_flags: <defaults>
</compile_context>

<pallas_src>
import functools

import jax
import jax.numpy as jnp
import numpy as np
from jax import lax
from jax.experimental import pallas as pl
from jax.experimental.pallas import tpu as pltpu

EPS = 1e-12          # torch.nn.functional.normalize default eps
EPS2 = EPS * EPS     # clamp applied to squared norms (equivalent semantics)


def netvlad_kernel(x_ref, w_ref, b_ref, c_ref, out_ref, *, mxu_dtype):
    """One grid step == one block of B batch elements (fully batched math).

    x_ref  : (B, C, S)  descriptors, native NCHW order (S = H*W), native dtype
    w_ref  : (K, C)     conv weight  = 2 * alpha * centroids
    b_ref  : (K, 1)     conv bias    = -alpha * ||centroid_k||_2
    c_ref  : (K, C)     centroids
    out_ref: (B, K, C)  per-batch VLAD (intra- and globally L2 normalized)
    """
    B, C, S = x_ref.shape
    K = w_ref.shape[0]

    x = x_ref[...]
    x_f = x.astype(jnp.float32)         # elementwise math always in f32
    x_m = x.astype(mxu_dtype)           # single MXU-operand cast, reused twice

    w_b = jnp.broadcast_to(w_ref[...].astype(mxu_dtype)[None], (B, K, C))
    bias = b_ref[...].reshape(1, K, 1)                                   # (1,K,1)
    cent = c_ref[...]                                                    # (K, C)

    # Inverse descriptor norms; applied AFTER the matmul (deferred scaling).
    inv_n = lax.rsqrt(
        jnp.maximum(jnp.sum(x_f * x_f, axis=1, keepdims=True), EPS2))   # (B,1,S)

    # Soft assignment for the whole block: (B,K,C) @ (B,C,S) -> (B,K,S).
    logits = lax.dot_general(
        w_b, x_m, (((2,), (1,)), ((0,), (0,))),
        preferred_element_type=jnp.float32)
    logits = logits * inv_n + bias                                       # (B,K,S)

    # Softmax over clusters K (sublane axis).
    m = jnp.max(logits, axis=1, keepdims=True)                           # (B,1,S)
    e = jnp.exp(logits - m)
    a = e * pl.reciprocal(jnp.sum(e, axis=1, keepdims=True), approx=False)

    # vlad[b,k,c] = sum_s a[b,k,s]*xn[b,c,s] - (sum_s a[b,k,s]) * cent[k,c]
    #            = ((a * inv_n) @ x^T)[b,k,c] - a_sum[b,k] * cent[k,c]
    va = lax.dot_general(
        (a * inv_n).astype(mxu_dtype), x_m, (((2,), (2,)), ((0,), (0,))),
        preferred_element_type=jnp.float32)                              # (B,K,C)
    a_sum = jnp.sum(a, axis=2, keepdims=True)                            # (B,K,1)
    vlad = va - a_sum * cent[None]                                       # (B,K,C)

    # Intra-normalization (L2 per cluster row, over C lanes).
    rn2 = jnp.sum(vlad * vlad, axis=2, keepdims=True)                    # (B,K,1)
    inv_rn = lax.rsqrt(jnp.maximum(rn2, EPS2))
    vlad_n = vlad * inv_rn

    # Global L2 norm rebuilt from the per-row norms (K-length reduce only;
    # algebraically identical to re-reducing the normalized (K, C) tile).
    gn2 = jnp.sum(rn2 * (inv_rn * inv_rn), axis=1, keepdims=True)        # (B,1,1)
    inv_gn = lax.rsqrt(jnp.maximum(gn2, EPS2))

    out_ref[...] = (vlad_n * inv_gn).astype(out_ref.dtype)


def _tpu_generation_params():
    """Best-effort (block_vmem_budget_bytes, vmem_limit_bytes_or_None, n_tc)."""
    try:
        kind = jax.devices()[0].device_kind.lower()
    except Exception:  # pragma: no cover - defensive
        kind = ""
    if "v5 lite" in kind or "v5e" in kind or "v5lite" in kind:
        # 1 TC, 128 MiB physical VMEM (16 MiB default scoped) -> raise limit.
        return 12 << 20, 64 << 20, 1
    if "v6" in kind:
        # 1 TC, 128 MiB physical VMEM -> big blocks, fewer grid steps.
        return 24 << 20, 64 << 20, 1
    if "v7" in kind or "tpu7" in kind:
        # 2 TCs but only 64 MiB physical VMEM -> smaller cap, even grid.
        return 16 << 20, 40 << 20, 2
    # Unknown generation (v4/v5p/...): conservative budget, default limits.
    return 10 << 20, None, 2


def _choose_batch_block(N, C, S, K, x_itemsize, budget_bytes, n_tc):
    """Largest divisor of N whose block fits the VMEM budget; among those,
    prefer blocks whose grid length is a multiple of the TensorCore count so
    megacore sharding stays balanced (constraint dropped when n_tc == 1)."""
    def vmem_bytes(b):
        return (b * C * S * (2 * x_itemsize + 2 * 4)   # x block (dbl-buf) + f32/mxu casts
                + b * K * C * 4 * 6                    # w_b + va/vlad/vlad_n + out (dbl-buf)
                + b * K * S * 4 * 4                    # logits / exp / softmax / scaled a
                + b * S * 4 * 3                        # inv_n / max / denom
                + 4 * (2 * K * C + K) * 4)             # resident w / bias / centroids

    fitting = [b for b in range(1, N + 1)
               if N % b == 0 and vmem_bytes(b) <= budget_bytes]
    if not fitting:
        return 1
    balanced = [b for b in fitting if (N // b) % n_tc == 0]
    return max(balanced) if balanced else max(fitting)


def netvlad_forward(x_nchw, centroids, alpha=100.0, *,
                    mxu_dtype=jnp.float32, batch_block=None):
    """x_nchw: (N, C, H, W) any float dtype; centroids: (K, C).
    Returns (N, K*C) float32.

    Set mxu_dtype=jnp.bfloat16 on v6e/v7x to feed the MXU in bf16 (f32 acc).
    """
    N, C, H, W = x_nchw.shape
    K = centroids.shape[0]
    S = H * W

    centroids = centroids.astype(jnp.float32)
    # Derived conv parameters (exactly as NetVLAD._init_params).
    w = (2.0 * alpha * centroids).astype(jnp.float32)                   # (K, C)
    b = (-alpha * jnp.sqrt(jnp.sum(centroids * centroids, axis=1)))     # (K,)
    b = b.reshape(K, 1).astype(jnp.float32)

    # Free view -- NO transpose, NO dtype-upcast copy in HBM.
    x_ncs = x_nchw.reshape(N, C, S)

    budget, vmem_limit, n_tc = _tpu_generation_params()
    if batch_block is not None:
        B = batch_block
    else:
        B = _choose_batch_block(N, C, S, K, jnp.dtype(x_ncs.dtype).itemsize,
                                budget, n_tc)
    assert N % B == 0, "batch_block must divide the batch size"
    grid = (N // B,)

    kernel = functools.partial(netvlad_kernel, mxu_dtype=mxu_dtype)

    cp_kwargs = dict(dimension_semantics=("parallel",))
    if vmem_limit is not None:
        cp_kwargs["vmem_limit_bytes"] = int(vmem_limit)

    out = pl.pallas_call(
        kernel,
        out_shape=jax.ShapeDtypeStruct((N, K, C), jnp.float32),
        grid_spec=pltpu.PrefetchScalarGridSpec(
            num_scalar_prefetch=0,
            grid=grid,
            in_specs=[
                pl.BlockSpec((B, C, S), lambda n: (n, 0, 0)),
                pl.BlockSpec((K, C), lambda n: (0, 0)),
                pl.BlockSpec((K, 1), lambda n: (0, 0)),
                pl.BlockSpec((K, C), lambda n: (0, 0)),
            ],
            out_specs=pl.BlockSpec((B, K, C), lambda n: (n, 0, 0)),
        ),
        compiler_params=pltpu.CompilerParams(**cp_kwargs),
    )(x_ncs, w, b, centroids)

    # (N, K, C) -> (N, K*C) matches torch's vlad.view(N, -1) ordering.
    return out.reshape(N, K * C)


def netvlad_reference(x_nchw, centroids, alpha=100.0):
    """Pure-JAX reference mirroring the PyTorch forward, for validation."""
    N, C, H, W = x_nchw.shape
    K = centroids.shape[0]
    S = H * W
    x = x_nchw.astype(jnp.float32)
    xn = x / jnp.maximum(jnp.sqrt(jnp.sum(x * x, axis=1, keepdims=True)), EPS)
    w = 2.0 * alpha * centroids
    b = -alpha * jnp.sqrt(jnp.sum(centroids * centroids, axis=1))
    xf = xn.reshape(N, C, S)                                   # (N, C, S)
    logits = jnp.einsum("ncs,kc->nks", xf, w) + b[None, :, None]
    a = jax.nn.softmax(logits, axis=1)                         # (N, K, S)
    vlad = (jnp.einsum("nks,ncs->nkc", a, xf)
            - jnp.sum(a, axis=-1)[..., None] * centroids[None])
    vlad = vlad / jnp.maximum(
        jnp.sqrt(jnp.sum(vlad * vlad, axis=2, keepdims=True)), EPS)
    vlad = vlad.reshape(N, K * C)
    vlad = vlad / jnp.maximum(
        jnp.sqrt(jnp.sum(vlad * vlad, axis=1, keepdims=True)), EPS)
    return vlad


if __name__ == "__main__":
    # Small shapes consistent with the module (descriptor dim 128 keeps the
    # output lane axis dense); batch=2, 8x8 spatial, 32 clusters.
    N, C, H, W = 2, 128, 8, 8
    K = 32
    alpha = 100.0

    key = jax.random.PRNGKey(0)
    kx, kc = jax.random.split(key)
    x = jax.random.normal(kx, (N, C, H, W), dtype=jnp.float32)
    centroids = jax.random.uniform(kc, (K, C), dtype=jnp.float32)  # torch.rand

    # Strict f32 MXU path: validated against the f32 reference.
    out = jax.block_until_ready(netvlad_forward(x, centroids, alpha=alpha))
    ref = jax.block_until_ready(netvlad_reference(x, centroids, alpha=alpha))
    np.testing.assert_allclose(np.asarray(out), np.asarray(ref),
                               rtol=1e-4, atol=1e-5)
    assert out.shape == (N, K * C)

    # Native-dtype DMA + bf16 MXU path (recommended on v6e/v7x).  With
    # alpha=100 the soft assignment is near-hard, so bf16 rounding can move
    # borderline descriptors between clusters -- only a sanity check is
    # meaningful against the f32 reference here.
    x_bf16 = x.astype(jnp.bfloat16)
    out_bf16 = jax.block_until_ready(
        netvlad_forward(x_bf16, centroids, alpha=alpha, mxu_dtype=jnp.bfloat16))
    assert out_bf16.shape == (N, K * C)
    assert bool(jnp.all(jnp.isfinite(out_bf16)))

    print("KERNEL_OK")
</pallas_src>

<mosaic_0001>
module attributes {stable_mosaic.version = 11 : i64} {
  func.func @netvlad_kernel(%arg0: i32, %arg1: memref<1x128x64xf32, #tpu.memory_space<vmem>>, %arg2: memref<32x128xf32, #tpu.memory_space<vmem>>, %arg3: memref<32x1xf32, #tpu.memory_space<vmem>>, %arg4: memref<32x128xf32, #tpu.memory_space<vmem>>, %arg5: memref<1x32x128xf32, #tpu.memory_space<vmem>>) attributes {dimension_semantics = [#tpu.dimension_semantics<parallel>], iteration_bounds = array<i64: 2>, scalar_prefetch = 0 : i64, scratch_operands = 0 : i64, tpu.core_type = #tpu.core_type<tc>, window_params = [{transform_indices = @transform_0, window_bounds = array<i64: 1, 128, 64>}, {pipeline_mode = #tpu.pipeline_mode<synchronous>, transform_indices = @transform_1, window_bounds = array<i64: 32, 128>}, {pipeline_mode = #tpu.pipeline_mode<synchronous>, transform_indices = @transform_2, window_bounds = array<i64: 32, 1>}, {pipeline_mode = #tpu.pipeline_mode<synchronous>, transform_indices = @transform_3, window_bounds = array<i64: 32, 128>}, {transform_indices = @transform_4, window_bounds = array<i64: 1, 32, 128>}]} {
    %c0 = arith.constant 0 : index
    %c0_0 = arith.constant 0 : index
    %c0_1 = arith.constant 0 : index
    %0 = vector.load %arg1[%c0, %c0_0, %c0_1] : memref<1x128x64xf32, #tpu.memory_space<vmem>>, vector<1x128x64xf32>
    %c0_2 = arith.constant 0 : index
    %c0_3 = arith.constant 0 : index
    %1 = vector.load %arg2[%c0_2, %c0_3] : memref<32x128xf32, #tpu.memory_space<vmem>>, vector<32x128xf32>
    %2 = vector.shape_cast %1 : vector<32x128xf32> to vector<1x32x128xf32>
    %c0_4 = arith.constant 0 : index
    %c0_5 = arith.constant 0 : index
    %3 = vector.load %arg3[%c0_4, %c0_5] : memref<32x1xf32, #tpu.memory_space<vmem>>, vector<32x1xf32>
    %4 = vector.shape_cast %3 : vector<32x1xf32> to vector<1x32x1xf32>
    %c0_6 = arith.constant 0 : index
    %c0_7 = arith.constant 0 : index
    %5 = vector.load %arg4[%c0_6, %c0_7] : memref<32x128xf32, #tpu.memory_space<vmem>>, vector<32x128xf32>
    %6 = arith.mulf %0, %0 : vector<1x128x64xf32>
    %cst = arith.constant dense<0.000000e+00> : vector<1x64xf32>
    %7 = vector.multi_reduction <add>, %6, %cst [1] : vector<1x128x64xf32> to vector<1x64xf32>
    %8 = vector.shape_cast %7 : vector<1x64xf32> to vector<1x1x64xf32>
    %cst_8 = arith.constant 1.000000e-24 : f32
    %9 = vector.broadcast %cst_8 : f32 to vector<1x1x64xf32>
    %10 = arith.maximumf %8, %9 : vector<1x1x64xf32>
    %11 = math.rsqrt %10 : vector<1x1x64xf32>
    %cst_9 = arith.constant dense<0.000000e+00> : vector<1x32x64xf32>
    %12 = tpu.matmul %2, %0, %cst_9 {dimension_numbers = #tpu.dot_dimension_numbers<[2], [1], [1], [2], [0, 0, 0, 1, 1, 2], [0], [0]>} : vector<1x32x128xf32>, vector<1x128x64xf32>, vector<1x32x64xf32> -> vector<1x32x64xf32>
    %13 = vector.broadcast %11 : vector<1x1x64xf32> to vector<1x32x64xf32>
    %14 = arith.mulf %12, %13 : vector<1x32x64xf32>
    %15 = vector.broadcast %4 : vector<1x32x1xf32> to vector<1x32x64xf32>
    %16 = arith.addf %14, %15 : vector<1x32x64xf32>
    %cst_10 = arith.constant dense<0xFF800000> : vector<1x64xf32>
    %17 = vector.multi_reduction <maximumf>, %16, %cst_10 [1] : vector<1x32x64xf32> to vector<1x64xf32>
    %18 = vector.shape_cast %17 : vector<1x64xf32> to vector<1x1x64xf32>
    %19 = vector.broadcast %18 : vector<1x1x64xf32> to vector<1x32x64xf32>
    %20 = arith.subf %16, %19 : vector<1x32x64xf32>
    %21 = math.exp %20 : vector<1x32x64xf32>
    %cst_11 = arith.constant dense<0.000000e+00> : vector<1x64xf32>
    %22 = vector.multi_reduction <add>, %21, %cst_11 [1] : vector<1x32x64xf32> to vector<1x64xf32>
    %23 = vector.shape_cast %22 : vector<1x64xf32> to vector<1x1x64xf32>
    %24 = tpu.reciprocal %23 : vector<1x1x64xf32> -> vector<1x1x64xf32>
    %25 = vector.broadcast %24 : vector<1x1x64xf32> to vector<1x32x64xf32>
    %26 = arith.mulf %21, %25 : vector<1x32x64xf32>
    %27 = vector.broadcast %11 : vector<1x1x64xf32> to vector<1x32x64xf32>
    %28 = arith.mulf %26, %27 : vector<1x32x64xf32>
    %cst_12 = arith.constant dense<0.000000e+00> : vector<1x32x128xf32>
    %29 = tpu.matmul %28, %0, %cst_12 {dimension_numbers = #tpu.dot_dimension_numbers<[2], [2], [1], [1], [0, 0, 0, 1, 1, 1], [0], [0]>} : vector<1x32x64xf32>, vector<1x128x64xf32>, vector<1x32x128xf32> -> vector<1x32x128xf32>
    %cst_13 = arith.constant dense<0.000000e+00> : vector<1x32xf32>
    %30 = vector.multi_reduction <add>, %26, %cst_13 [2] : vector<1x32x64xf32> to vector<1x32xf32>
    %31 = vector.shape_cast %30 : vector<1x32xf32> to vector<1x32x1xf32>
    %32 = vector.shape_cast %5 : vector<32x128xf32> to vector<1x32x128xf32>
    %33 = vector.broadcast %31 : vector<1x32x1xf32> to vector<1x32x128xf32>
    %34 = arith.mulf %33, %32 : vector<1x32x128xf32>
    %35 = arith.subf %29, %34 : vector<1x32x128xf32>
    %36 = arith.mulf %35, %35 : vector<1x32x128xf32>
    %cst_14 = arith.constant dense<0.000000e+00> : vector<1x32xf32>
    %37 = vector.multi_reduction <add>, %36, %cst_14 [2] : vector<1x32x128xf32> to vector<1x32xf32>
    %38 = vector.shape_cast %37 : vector<1x32xf32> to vector<1x32x1xf32>
    %cst_15 = arith.constant 1.000000e-24 : f32
    %39 = vector.broadcast %cst_15 : f32 to vector<1x32x1xf32>
    %40 = arith.maximumf %38, %39 : vector<1x32x1xf32>
    %41 = math.rsqrt %40 : vector<1x32x1xf32>
    %42 = vector.broadcast %41 : vector<1x32x1xf32> to vector<1x32x128xf32>
    %43 = arith.mulf %35, %42 : vector<1x32x128xf32>
    %44 = arith.mulf %41, %41 : vector<1x32x1xf32>
    %45 = arith.mulf %38, %44 : vector<1x32x1xf32>
    %cst_16 = arith.constant dense<0.000000e+00> : vector<1x1xf32>
    %46 = vector.multi_reduction <add>, %45, %cst_16 [1] : vector<1x32x1xf32> to vector<1x1xf32>
    %47 = vector.shape_cast %46 : vector<1x1xf32> to vector<1x1x1xf32>
    %cst_17 = arith.constant 1.000000e-24 : f32
    %48 = vector.broadcast %cst_17 : f32 to vector<1x1x1xf32>
    %49 = arith.maximumf %47, %48 : vector<1x1x1xf32>
    %50 = math.rsqrt %49 : vector<1x1x1xf32>
    %51 = vector.broadcast %50 : vector<1x1x1xf32> to vector<1x32x128xf32>
    %52 = arith.mulf %43, %51 : vector<1x32x128xf32>
    %c0_18 = arith.constant 0 : index
    %c0_19 = arith.constant 0 : index
    %c0_20 = arith.constant 0 : index
    %53 = vector.load %arg5[%c0_18, %c0_19, %c0_20] : memref<1x32x128xf32, #tpu.memory_space<vmem>>, vector<1x32x128xf32>
    tpu.vector_store %arg5[%c0_18, %c0_19, %c0_20], %52 {strides = array<i32>} : memref<1x32x128xf32, #tpu.memory_space<vmem>>, vector<1x32x128xf32>,
    return
  }
  func.func @transform_0(%arg0: i32) -> (i32, i32, i32) {
    %c0_i32 = arith.constant 0 : i32
    %c0_i32_0 = arith.constant 0 : i32
    %c0_i32_1 = arith.constant 0 : i32
    return %arg0, %c0_i32, %c0_i32_0 : i32, i32, i32
  }
  func.func @transform_1(%arg0: i32) -> (i32, i32) {
    %c0_i32 = arith.constant 0 : i32
    %c0_i32_0 = arith.constant 0 : i32
    %c0_i32_1 = arith.constant 0 : i32
    return %c0_i32, %c0_i32_0 : i32, i32
  }
  func.func @transform_2(%arg0: i32) -> (i32, i32) {
    %c0_i32 = arith.constant 0 : i32
    %c0_i32_0 = arith.constant 0 : i32
    %c0_i32_1 = arith.constant 0 : i32
    return %c0_i32, %c0_i32_0 : i32, i32
  }
  func.func @transform_3(%arg0: i32) -> (i32, i32) {
    %c0_i32 = arith.constant 0 : i32
    %c0_i32_0 = arith.constant 0 : i32
    %c0_i32_1 = arith.constant 0 : i32
    return %c0_i32, %c0_i32_0 : i32, i32
  }
  func.func @transform_4(%arg0: i32) -> (i32, i32, i32) {
    %c0_i32 = arith.constant 0 : i32
    %c0_i32_0 = arith.constant 0 : i32
    %c0_i32_1 = arith.constant 0 : i32
    return %arg0, %c0_i32, %c0_i32_0 : i32, i32, i32
  }
}

</mosaic_0001>

<llo_original>
// kernel: tpu_custom_call.1
$region0: #{tpu_custom_call.1}
  #allocation0 [shape = 'u32[]', space=smem, size = 0x4, offset = 0x4, fixed_abs, tag = 'smem constant byte address 0x4 - core index']
  #allocation1 [shape = 'u32[144,128]{1,0:T(1,128)}', space=vmem, size = 0x12000, scoped, tag = 'internal scratch']
  %s0 = inlined_call_operand.vmem [shape: f32[2,128,64], index: 0, kind: input, shape index: {}]
  %s1 = inlined_call_operand.vmem [shape: f32[32,128], index: 1, kind: input, shape index: {}]
  %s2 = inlined_call_operand.vmem [shape: f32[32,1], index: 2, kind: input, shape index: {}]
  %s3 = inlined_call_operand.vmem [shape: f32[32,128], index: 3, kind: input, shape index: {}]
  %s4 = inlined_call_operand.hbm [shape: f32[2,32,128], index: 4, kind: output, shape index: {}]
  %s5 = sld [smem:[#allocation0]]
  $region49: #{tpu_custom_call.1} parent=0
    _
  %s7 = ssub.s32 1, %s5
  %s8 = scalar_select 0, %s7, %s5
  $region1: #{tpu_custom_call.1} parent=0
    #allocation2 [shape = 'u8[32768]{0}', space=vmem, size = 0x8000, scoped, tag = 'output window, operand 0']
    #allocation3 [shape = 's32[2]{0}', space=sflag, size = 0x8, scoped, tag = 'scoped memory for tpu_custom_call.1']
    %9 = vsyncpa [#allocation3], 0
    %s10 = scalar_lea.sflag [#allocation3], 1
    %11 = vsyncpa %s10, 0
    loop: start=0, step=1, limit=4
    $region2: #{tpu_custom_call.1} parent=1 // loop_pre_header
      _
    $region3: #{tpu_custom_call.1} parent=1 // loop_header
      %s13 = sphi 0, %s17
      %p14 = scmp.ge.s32.totalorder %s13, 4
      %s23 = sphi 0, %s25
      %s26 = sphi 0, %s23
      %s27 = sphi 0, %s26
      %s43 = sphi 0, %s27
      %s47 = sphi 0, %s47
      %s49 = sphi 0, %s47
      %s50 = sphi 0, %s49
      %s64 = sphi 0, %s50
      %s68 = sphi 0, %s68
      %s70 = sphi 0, %s68
      %s71 = sphi 0, %s70
      %s85 = sphi 0, %s71
      %s89 = sphi 0, %s89
      %s91 = sphi 0, %s89
      %s92 = sphi 0, %s91
      %s106 = sphi 0, %s92
      %s112 = sphi 0, %s114
      %s115 = sphi 0, %s112
      %s116 = sphi 0, %s115
      %s132 = sphi 0, %s116
    $region4: #{tpu_custom_call.1} parent=1 // loop_header_branch
      %16 = sbr.rel (%p14) target = $region8
    $region5: #{tpu_custom_call.1} parent=1 // loop_body
      %s18 = ssub.s32 %s13, 1
      %s19 = ssub.s32 %s13, 2
      %s20 = sadd.s32 %s13, 1
      %s21 = ssub.s32 %s13, %s20
      %p22 = scmp.eq.s32.totalorder %s21, 0
      %s24 = sadd.s32 %s23, 1
      %s25 = scalar_select %p22, %s23, %s24
      %p28 = pneg %p22
      %p29 = scmp.eq.s32.totalorder %s13, 1
      %p30 = por %p28, %p29
      %p31 = scmp.ne.s32.totalorder %s23, %s26
      %p32 = scmp.eq.s32.totalorder %s13, 0
      %p33 = por %p31, %p32
      %p34 = scmp.ne.s32.totalorder %s23, %s26
      %p35 = scmp.eq.s32.totalorder %s18, 1
      %p36 = por %p34, %p35
      %p37 = scmp.ne.s32.totalorder %s26, %s27
      %p38 = scmp.eq.s32.totalorder %s18, 0
      %p39 = por %p37, %p38
      %p40 = scmp.ne.s32.totalorder %s26, %s27
      %p41 = scmp.eq.s32.totalorder %s19, 1
      %p42 = por %p40, %p41
      %p44 = scmp.ne.s32.totalorder %s27, %s43
      %p45 = scmp.eq.s32.totalorder %s19, 0
      %p46 = por %p44, %p45
      %s48 = sadd.s32 %s47, 1
      %p51 = scmp.eq.s32.totalorder %s13, 1
      %p52 = scmp.ne.s32.totalorder %s47, %s49
      %p53 = scmp.eq.s32.totalorder %s13, 0
      %p54 = por %p52, %p53
      %p55 = scmp.ne.s32.totalorder %s47, %s49
      %p56 = scmp.eq.s32.totalorder %s18, 1
      %p57 = por %p55, %p56
      %p58 = scmp.ne.s32.totalorder %s49, %s50
      %p59 = scmp.eq.s32.totalorder %s18, 0
      %p60 = por %p58, %p59
      %p61 = scmp.ne.s32.totalorder %s49, %s50
      %p62 = scmp.eq.s32.totalorder %s19, 1
      %p63 = por %p61, %p62
      %p65 = scmp.ne.s32.totalorder %s50, %s64
      %p66 = scmp.eq.s32.totalorder %s19, 0
      %p67 = por %p65, %p66
      %s69 = sadd.s32 %s68, 1
      %p72 = scmp.eq.s32.totalorder %s13, 1
      %p73 = scmp.ne.s32.totalorder %s68, %s70
      %p74 = scmp.eq.s32.totalorder %s13, 0
      %p75 = por %p73, %p74
      %p76 = scmp.ne.s32.totalorder %s68, %s70
      %p77 = scmp.eq.s32.totalorder %s18, 1
      %p78 = por %p76, %p77
      %p79 = scmp.ne.s32.totalorder %s70, %s71
      %p80 = scmp.eq.s32.totalorder %s18, 0
      %p81 = por %p79, %p80
      %p82 = scmp.ne.s32.totalorder %s70, %s71
      %p83 = scmp.eq.s32.totalorder %s19, 1
      %p84 = por %p82, %p83
      %p86 = scmp.ne.s32.totalorder %s71, %s85
      %p87 = scmp.eq.s32.totalorder %s19, 0
      %p88 = por %p86, %p87
      %s90 = sadd.s32 %s89, 1
      %p93 = scmp.eq.s32.totalorder %s13, 1
      %p94 = scmp.ne.s32.totalorder %s89, %s91
      %p95 = scmp.eq.s32.totalorder %s13, 0
      %p96 = por %p94, %p95
      %p97 = scmp.ne.s32.totalorder %s89, %s91
      %p98 = scmp.eq.s32.totalorder %s18, 1
      %p99 = por %p97, %p98
      %p100 = scmp.ne.s32.totalorder %s91, %s92
      %p101 = scmp.eq.s32.totalorder %s18, 0
      %p102 = por %p100, %p101
      %p103 = scmp.ne.s32.totalorder %s91, %s92
      %p104 = scmp.eq.s32.totalorder %s19, 1
      %p105 = por %p103, %p104
      %p107 = scmp.ne.s32.totalorder %s92, %s106
      %p108 = scmp.eq.s32.totalorder %s19, 0
      %p109 = por %p107, %p108
      %s110 = ssub.s32 %s13, %s20
      %p111 = scmp.eq.s32.totalorder %s110, 0
      %s113 = sadd.s32 %s112, 1
      %s114 = scalar_select %p111, %s112, %s113
      %p117 = pneg %p111
      %p118 = scmp.eq.s32.totalorder %s13, 1
      %p119 = por %p117, %p118
      %p120 = scmp.ne.s32.totalorder %s112, %s115
      %p121 = scmp.eq.s32.totalorder %s13, 0
      %p122 = por %p120, %p121
      %p123 = scmp.ne.s32.totalorder %s112, %s115
      %p124 = scmp.eq.s32.totalorder %s18, 1
      %p125 = por %p123, %p124
      %p126 = scmp.ne.s32.totalorder %s115, %s116
      %p127 = scmp.eq.s32.totalorder %s18, 0
      %p128 = por %p126, %p127
      %p129 = scmp.ne.s32.totalorder %s115, %s116
      %p130 = scmp.eq.s32.totalorder %s19, 1
      %p131 = por %p129, %p130
      %p133 = scmp.ne.s32.totalorder %s116, %s132
      %p134 = scmp.eq.s32.totalorder %s19, 0
      %p135 = por %p133, %p134
      %p136 = scmp.le.s32.totalorder 1, %s13
      %p137 = scmp.lt.s32.totalorder %s13, 3
      %p138 = pnand %p136, %p137
      %p139 = pneg %p138
      // Predicated region
      $region9: #{tpu_custom_call.1} parent=5 // pred_check
        _
      $region10: #{tpu_custom_call.1} parent=5 // pred_check_branch
        %141 = sbr.rel (%p138) target = $region12
      $region11: #{tpu_custom_call.1} parent=5 // pred_region
        %s142 = ssub.s32 %s13, 1
        // Predicated region
        $region13: #{tpu_custom_call.1} parent=11 // pred_check
          %p143 = pneg %p60
        $region14: #{tpu_custom_call.1} parent=11 // pred_check_branch
          %145 = sbr.rel (%p143) target = $region16
        $region15: #{tpu_custom_call.1} parent=11 // pred_region
          _
        $region16: #{tpu_custom_call.1} parent=11 // pred_fallthru
          _
        // Predicated region
        $region17: #{tpu_custom_call.1} parent=11 // pred_check
          %p146 = pneg %p81
        $region18: #{tpu_custom_call.1} parent=11 // pred_check_branch
          %148 = sbr.rel (%p146) target = $region20
        $region19: #{tpu_custom_call.1} parent=11 // pred_region
          _
        $region20: #{tpu_custom_call.1} parent=11 // pred_fallthru
          _
        // Predicated region
        $region21: #{tpu_custom_call.1} parent=11 // pred_check
          %p149 = pneg %p102
        $region22: #{tpu_custom_call.1} parent=11 // pred_check_branch
          %151 = sbr.rel (%p149) target = $region24
        $region23: #{tpu_custom_call.1} parent=11 // pred_region
          _
        $region24: #{tpu_custom_call.1} parent=11 // pred_fallthru
          _
      $region12: #{tpu_custom_call.1} parent=5 // pred_fallthru
        _
      %p152 = scmp.lt.s32.totalorder %s13, 2
      // Predicated region
      $region25: #{tpu_custom_call.1} parent=5 // pred_check
        %p153 = pneg %p152
      $region26: #{tpu_custom_call.1} parent=5 // pred_check_branch
        %155 = sbr.rel (%p153) target = $region28
      $region27: #{tpu_custom_call.1} parent=5 // pred_region
        // Predicated region
        $region29: #{tpu_custom_call.1} parent=27 // pred_check
          %p156 = pneg %p33
        $region30: #{tpu_custom_call.1} parent=27 // pred_check_branch
          %158 = sbr.rel (%p156) target = $region32
        $region31: #{tpu_custom_call.1} parent=27 // pred_region
          %p159 = scmp.lt.s32.totalorder %s13, 1
          %s160 = scalar_select %p159, %s13, 1
          %s161 = smul.addr %s160, 16
          %s162 = smul.addr %s161, 8
          %s163 = scalar_lea.vmem %s0, %s162
        $region32: #{tpu_custom_call.1} parent=27 // pred_fallthru
          _
      $region28: #{tpu_custom_call.1} parent=5 // pred_fallthru
        _
      %p164 = scmp.le.s32.totalorder 1, %s13
      %p165 = scmp.lt.s32.totalorder %s13, 3
      %p166 = pnand %p164, %p165
      %p167 = pneg %p166
      // Predicated region
      $region33: #{tpu_custom_call.1} parent=5 // pred_check
        _
      $region34: #{tpu_custom_call.1} parent=5 // pred_check_branch
        %169 = sbr.rel (%p166) target = $region36
      $region35: #{tpu_custom_call.1} parent=5 // pred_region
        %s170 = ssub.s32 %s13, 1
        %p171 = scmp.lt.s32.totalorder %s18, 1
        %s172 = scalar_select %p171, %s18, 1
        %s173 = smul.addr %s172, 16
        %s174 = smul.addr %s173, 8
        %s175 = scalar_lea.vmem %s0, %s174
        %p176 = pneg %p39
        %p177 = pneg %p36
        %p178 = pneg %p60
        %p179 = pneg %p57
        %p180 = pneg %p81
        %p181 = pneg %p78
        %p182 = pneg %p102
        %p183 = pneg %p99
        %p184 = pneg %p128
        %p185 = pneg %p125
        %s186 = sand.u32 %s115, 1
        %s187 = scalar_lea.sflag [#allocation3], %s186
        %s188 = sand.u32 %s115, 1
        %s189 = smul.addr %s188, 32
        %s190 = scalar_lea.vmem [#allocation2], %s189
        %p191 = scmp.lt.s32.totalorder %s18, 1
        %s192 = scalar_select %p191, %s18, 1
        %s193 = smul.addr %s192, 16
        %s194 = smul.addr %s193, 8
        %s195 = scalar_lea.vmem %s0, %s194
        %v196 = vld [vmem:[%s195] sm:$0xff]
        %v197 = vld [vmem:[%s195 + $0x8] sm:$0xff]
        %v198 = vld [vmem:[%s195 + $0x10] sm:$0xff]
        %v199 = vld [vmem:[%s195 + $0x18] sm:$0xff]
        %v200 = vld [vmem:[%s195 + $0x20] sm:$0xff]
        %v201 = vld [vmem:[%s195 + $0x28] sm:$0xff]
        %v202 = vld [vmem:[%s195 + $0x30] sm:$0xff]
        %v203 = vld [vmem:[%s195 + $0x38] sm:$0xff]
        %v204 = vld [vmem:[%s195 + $0x40] sm:$0xff]
        %v205 = vld [vmem:[%s195 + $0x48] sm:$0xff]
        %v206 = vld [vmem:[%s195 + $0x50] sm:$0xff]
        %v207 = vld [vmem:[%s195 + $0x58] sm:$0xff]
        %v208 = vld [vmem:[%s195 + $0x60] sm:$0xff]
        %v209 = vld [vmem:[%s195 + $0x68] sm:$0xff]
        %v210 = vld [vmem:[%s195 + $0x70] sm:$0xff]
        %v211 = vld [vmem:[%s195 + $0x78] sm:$0xff]
        %v212 = vld [vmem:[%s1] sm:$0xff]
        %v213 = vld [vmem:[%s1 + $0x8] sm:$0xff]
        %v214 = vld [vmem:[%s1 + $0x10] sm:$0xff]
        %v215 = vld [vmem:[%s1 + $0x18] sm:$0xff]
        %v216 = vld [vmem:[%s2] sm:$0xff]
        %v217 = vld [vmem:[%s2 + $0x8] sm:$0xff]
        %v218 = vld [vmem:[%s2 + $0x10] sm:$0xff]
        %v219 = vld [vmem:[%s2 + $0x18] sm:$0xff]
        %v220 = vld [vmem:[%s3] sm:$0xff]
        %v221 = vld [vmem:[%s3 + $0x8] sm:$0xff]
        %v222 = vld [vmem:[%s3 + $0x10] sm:$0xff]
        %v223 = vld [vmem:[%s3 + $0x18] sm:$0xff]
        %v224 = vmul.f32 %v196, %v196
        %v225 = vmul.f32 %v197, %v197
        %v226 = vmul.f32 %v198, %v198
        %v227 = vmul.f32 %v199, %v199
        %v228 = vmul.f32 %v200, %v200
        %v229 = vmul.f32 %v201, %v201
        %v230 = vmul.f32 %v202, %v202
        %v231 = vmul.f32 %v203, %v203
        %v232 = vmul.f32 %v204, %v204
        %v233 = vmul.f32 %v205, %v205
        %v234 = vmul.f32 %v206, %v206
        %v235 = vmul.f32 %v207, %v207
        %v236 = vmul.f32 %v208, %v208
        %v237 = vmul.f32 %v209, %v209
        %v238 = vmul.f32 %v210, %v210
        %v239 = vmul.f32 %v211, %v211
        %vm240 = vcmask 523264
        %v241 = vsel %vm240, %v224, 0.0
        %v242 = vsel %vm240, %v225, 0.0
        %v243 = vadd.f32 %v241, %v242
        %v244 = vsel %vm240, %v226, 0.0
        %v245 = vadd.f32 %v243, %v244
        %v246 = vsel %vm240, %v227, 0.0
        %v247 = vadd.f32 %v245, %v246
        %v248 = vsel %vm240, %v228, 0.0
        %v249 = vadd.f32 %v247, %v248
        %v250 = vsel %vm240, %v229, 0.0
        %v251 = vadd.f32 %v249, %v250
        %v252 = vsel %vm240, %v230, 0.0
        %v253 = vadd.f32 %v251, %v252
        %v254 = vsel %vm240, %v231, 0.0
        %v255 = vadd.f32 %v253, %v254
        %v256 = vsel %vm240, %v232, 0.0
        %v257 = vadd.f32 %v255, %v256
        %v258 = vsel %vm240, %v233, 0.0
        %v259 = vadd.f32 %v257, %v258
        %v260 = vsel %vm240, %v234, 0.0
        %v261 = vadd.f32 %v259, %v260
        %v262 = vsel %vm240, %v235, 0.0
        %v263 = vadd.f32 %v261, %v262
        %v264 = vsel %vm240, %v236, 0.0
        %v265 = vadd.f32 %v263, %v264
        %v266 = vsel %vm240, %v237, 0.0
        %v267 = vadd.f32 %v265, %v266
        %v268 = vsel %vm240, %v238, 0.0
        %v269 = vadd.f32 %v267, %v268
        %v270 = vsel %vm240, %v239, 0.0
        %v271 = vadd.f32 %v269, %v270
        %v272 = vrot.slane %v271, 4
        %v273 = vadd.f32 %v271, %v272
        %v274 = vrot.slane %v273, 2
        %v275 = vadd.f32 %v273, %v274
        %v276 = vrot.slane %v275, 1
        %v277 = vadd.f32 %v275, %v276
        %v278 = vmax.f32 %v277, 1e-24
        %v279 = vrsqrt.pop %v278
        %280 = vmatprep.subr.mxu0 0.0
        %281 = vmatpush1.msra.mxu0 %v196
        %282 = vmatprep.subr.mxu0 0.0
        %283 = vmatpush1.msra.mxu0 %v197
        %284 = vmatprep.subr.mxu0 0.0
        %285 = vmatpush1.msra.mxu0 %v198
        %286 = vmatprep.subr.mxu0 0.0
        %287 = vmatpush1.msra.mxu0 %v199
        %288 = vmatprep.subr.mxu0 0.0
        %289 = vmatpush1.msra.mxu0 %v200
        %290 = vmatprep.subr.mxu0 0.0
        %291 = vmatpush1.msra.mxu0 %v201
        %292 = vmatprep.subr.mxu0 0.0
        %293 = vmatpush1.msra.mxu0 %v202
        %294 = vmatprep.subr.mxu0 0.0
        %295 = vmatpush1.msra.mxu0 %v203
        %296 = vmatprep.subr.mxu0 0.0
        %297 = vmatpush1.msra.mxu0 %v204
        %298 = vmatprep.subr.mxu0 0.0
        %299 = vmatpush1.msra.mxu0 %v205
        %300 = vmatprep.subr.mxu0 0.0
        %301 = vmatpush1.msra.mxu0 %v206
        %302 = vmatprep.subr.mxu0 0.0
        %303 = vmatpush1.msra.mxu0 %v207
        %304 = vmatprep.subr.mxu0 0.0
        %305 = vmatpush1.msra.mxu0 %v208
        %306 = vmatprep.subr.mxu0 0.0
        %307 = vmatpush1.msra.mxu0 %v209
        %308 = vmatprep.subr.mxu0 0.0
        %309 = vmatpush1.msra.mxu0 %v210
        %310 = vmatprep.subr.mxu0 0.0
        %311 = vmatpush1.msra.mxu0 %v211
        %312 = vmatprep.subr.mxu0 0.0
        %313 = vmatpush1.msra.mxu0 0.0
        %314 = vmatprep.subr.mxu0 0.0
        %315 = vmatpush1.msra.mxu0 0.0
        %316 = vmatprep.subr.mxu0 0.0
        %317 = vmatpush1.msra.mxu0 0.0
        %318 = vmatprep.subr.mxu0 0.0
        %319 = vmatpush1.msra.mxu0 0.0
        %320 = vmatprep.subr.mxu0 0.0
        %321 = vmatpush1.msra.mxu0 0.0
        %322 = vmatprep.subr.mxu0 0.0
        %323 = vmatpush1.msra.mxu0 0.0
        %324 = vmatprep.subr.mxu0 0.0
        %325 = vmatpush1.msra.mxu0 0.0
        %326 = vmatprep.subr.mxu0 0.0
        %327 = vmatpush1.msra.mxu0 0.0
        %328 = vmatprep.subr.mxu0 0.0
        %329 = vmatpush1.msra.mxu0 0.0
        %330 = vmatprep.subr.mxu0 0.0
        %331 = vmatpush1.msra.mxu0 0.0
        %332 = vmatprep.subr.mxu0 0.0
        %333 = vmatpush1.msra.mxu0 0.0
        %334 = vmatprep.subr.mxu0 0.0
        %335 = vmatpush1.msra.mxu0 0.0
        %336 = vmatprep.subr.mxu0 0.0
        %337 = vmatpush1.msra.mxu0 0.0
        %338 = vmatprep.subr.mxu0 0.0
        %339 = vmatpush1.msra.mxu0 0.0
        %340 = vmatprep.subr.mxu0 0.0
        %341 = vmatpush1.msra.mxu0 0.0
        %342 = vmatprep.subr.mxu0 0.0
        %343 = vmatpush1.msra.mxu0 0.0
        %344 = vmatprep.mubr.f32.mxu0 0.0
        %345 = vmatmul.mubr.f32.gmra.mrb[0].mxu0 %v212
        %v346 = vpop.f32.mrb[0].mxu0
        %v347 = vadd.f32 0.0, %v346
        %v348 = vpop.f32.mrb[0].mxu0
        %349 = vmatprep.mubr.f32.mxu0 0.0
        %350 = vmatmul.mubr.f32.gmra.mrb[0].mxu0 %v213
        %v351 = vpop.f32.mrb[0].mxu0
        %v352 = vadd.f32 0.0, %v351
        %v353 = vpop.f32.mrb[0].mxu0
        %354 = vmatprep.mubr.f32.mxu0 0.0
        %355 = vmatmul.mubr.f32.gmra.mrb[0].mxu0 %v214
        %v356 = vpop.f32.mrb[0].mxu0
        %v357 = vadd.f32 0.0, %v356
        %v358 = vpop.f32.mrb[0].mxu0
        %359 = vmatprep.mubr.f32.mxu0 0.0
        %360 = vmatmul.mubr.f32.gmra.mrb[0].mxu0 %v215
        %v361 = vpop.f32.mrb[0].mxu0
        %v362 = vadd.f32 0.0, %v361
        %v363 = vpop.f32.mrb[0].mxu0
        %364 = vdwg.mxu0
        %v365 = vmul.f32 %v347, %v279
        %v366 = vmul.f32 %v352, %v279
        %v367 = vmul.f32 %v357, %v279
        %v368 = vmul.f32 %v362, %v279
        %370 = vset.pattern.permute.xlu0 0
        %371 = vperm.xlu0 %370, %v216
        %v372 = vpop.permute.xlu0 %371
        %375 = vset.pattern.permute.xlu0 0
        %376 = vperm.xlu0 %375, %v217
        %v377 = vpop.permute.xlu0 %376
        %380 = vset.pattern.permute.xlu0 0
        %381 = vperm.xlu0 %380, %v218
        %v382 = vpop.permute.xlu0 %381
        %385 = vset.pattern.permute.xlu0 0
        %386 = vperm.xlu0 %385, %v219
        %v387 = vpop.permute.xlu0 %386
        %v389 = vadd.f32 %v365, %v372
        %v390 = vadd.f32 %v366, %v377
        %v391 = vadd.f32 %v367, %v382
        %v392 = vadd.f32 %v368, %v387
        %v393 = vsel %vm240, %v389, -inf
        %v394 = vsel %vm240, %v390, -inf
        %v395 = vsel %vm240, %v391, -inf
        %v396 = vsel %vm240, %v392, -inf
        %v397 = vmax.f32 %v393, %v394
        %v398 = vmax.f32 %v395, %v396
        %v399 = vmax.f32 %v397, %v398
        %v400 = vrot.slane %v399, 4
        %v401 = vmax.f32 %v399, %v400
        %v402 = vrot.slane %v401, 2
        %v403 = vmax.f32 %v401, %v402
        %v404 = vrot.slane %v403, 1
        %v405 = vmax.f32 %v403, %v404
        %v406 = vsub.f32 %v389, %v405
        %v407 = vsub.f32 %v390, %v405
        %v408 = vsub.f32 %v391, %v405
        %v409 = vsub.f32 %v392, %v405
        %v410 = vmul.f32 %v406, 1.442695
        %v411 = vpow.pop %v410
        %v412 = vmul.f32 %v407, 1.442695
        %v413 = vpow.pop %v412
        %v414 = vmul.f32 %v408, 1.442695
        %v415 = vpow.pop %v414
        %v416 = vmul.f32 %v409, 1.442695
        %v417 = vpow.pop %v416
        %v418 = vsel %vm240, %v411, 0.0
        %v419 = vsel %vm240, %v413, 0.0
        %v420 = vadd.f32 %v418, %v419
        %v421 = vsel %vm240, %v415, 0.0
        %v422 = vadd.f32 %v420, %v421
        %v423 = vsel %vm240, %v417, 0.0
        %v424 = vadd.f32 %v422, %v423
        %v425 = vrot.slane %v424, 4
        %v426 = vadd.f32 %v424, %v425
        %v427 = vrot.slane %v426, 2
        %v428 = vadd.f32 %v426, %v427
        %v429 = vrot.slane %v428, 1
        %v430 = vadd.f32 %v428, %v429
        %v431 = vrcp.pop %v430
        %v432 = vmul.f32 %v411, %v431
        %v433 = vmul.f32 %v413, %v431
        %v434 = vmul.f32 %v415, %v431
        %v435 = vmul.f32 %v417, %v431
        %v436 = vmul.f32 %v432, %v279
        %v437 = vmul.f32 %v433, %v279
        %v438 = vmul.f32 %v434, %v279
        %v439 = vmul.f32 %v435, %v279
        %v441 = vsel %vm240, %v436, 0
        %v444 = vsel %vm240, %v437, 0
        %v447 = vsel %vm240, %v438, 0
        %v450 = vsel %vm240, %v439, 0
        %v453 = vsel %vm240, %v196, 0
        %v456 = vsel %vm240, %v197, 0
        %v459 = vsel %vm240, %v198, 0
        %v462 = vsel %vm240, %v199, 0
        %v465 = vsel %vm240, %v200, 0
        %v468 = vsel %vm240, %v201, 0
        %v471 = vsel %vm240, %v202, 0
        %v474 = vsel %vm240, %v203, 0
        %v477 = vsel %vm240, %v204, 0
        %v480 = vsel %vm240, %v205, 0
        %v483 = vsel %vm240, %v206, 0
        %v486 = vsel %vm240, %v207, 0
        %v489 = vsel %vm240, %v208, 0
        %v492 = vsel %vm240, %v209, 0
        %v495 = vsel %vm240, %v210, 0
        %v498 = vsel %vm240, %v211, 0
        %500 = vmatprep.subr.mxu0 0.0
        %501 = vmatpush1.xpose.msra.mxu0 %v453
        %502 = vmatprep.subr.mxu0 0.0
        %503 = vmatpush1.xpose.msra.mxu0 %v456
        %504 = vmatprep.subr.mxu0 0.0
        %505 = vmatpush1.xpose.msra.mxu0 %v459
        %506 = vmatprep.subr.mxu0 0.0
        %507 = vmatpush1.xpose.msra.mxu0 %v462
        %508 = vmatprep.subr.mxu0 0.0
        %509 = vmatpush1.xpose.msra.mxu0 %v465
        %510 = vmatprep.subr.mxu0 0.0
        %511 = vmatpush1.xpose.msra.mxu0 %v468
        %512 = vmatprep.subr.mxu0 0.0
        %513 = vmatpush1.xpose.msra.mxu0 %v471
        %514 = vmatprep.subr.mxu0 0.0
        %515 = vmatpush1.xpose.msra.mxu0 %v474
        %516 = vmatprep.subr.mxu0 0.0
        %517 = vmatpush1.xpose.msra.mxu0 %v477
        %518 = vmatprep.subr.mxu0 0.0
        %519 = vmatpush1.xpose.msra.mxu0 %v480
        %520 = vmatprep.subr.mxu0 0.0
        %521 = vmatpush1.xpose.msra.mxu0 %v483
        %522 = vmatprep.subr.mxu0 0.0
        %523 = vmatpush1.xpose.msra.mxu0 %v486
        %524 = vmatprep.subr.mxu0 0.0
        %525 = vmatpush1.xpose.msra.mxu0 %v489
        %526 = vmatprep.subr.mxu0 0.0
        %527 = vmatpush1.xpose.msra.mxu0 %v492
        %528 = vmatprep.subr.mxu0 0.0
        %529 = vmatpush1.xpose.msra.mxu0 %v495
        %530 = vmatprep.subr.mxu0 0.0
        %531 = vmatpush1.xpose.msra.mxu0 %v498
        %532 = vmatprep.subr.mxu0 0.0
        %533 = vmatpush1.xpose.msra.mxu0 0.0
        %534 = vmatprep.subr.mxu0 0.0
        %535 = vmatpush1.xpose.msra.mxu0 0.0
        %536 = vmatprep.subr.mxu0 0.0
        %537 = vmatpush1.xpose.msra.mxu0 0.0
        %538 = vmatprep.subr.mxu0 0.0
        %539 = vmatpush1.xpose.msra.mxu0 0.0
        %540 = vmatprep.subr.mxu0 0.0
        %541 = vmatpush1.xpose.msra.mxu0 0.0
        %542 = vmatprep.subr.mxu0 0.0
        %543 = vmatpush1.xpose.msra.mxu0 0.0
        %544 = vmatprep.subr.mxu0 0.0
        %545 = vmatpush1.xpose.msra.mxu0 0.0
        %546 = vmatprep.subr.mxu0 0.0
        %547 = vmatpush1.xpose.msra.mxu0 0.0
        %548 = vmatprep.subr.mxu0 0.0
        %549 = vmatpush1.xpose.msra.mxu0 0.0
        %550 = vmatprep.subr.mxu0 0.0
        %551 = vmatpush1.xpose.msra.mxu0 0.0
        %552 = vmatprep.subr.mxu0 0.0
        %553 = vmatpush1.xpose.msra.mxu0 0.0
        %554 = vmatprep.subr.mxu0 0.0
        %555 = vmatpush1.xpose.msra.mxu0 0.0
        %556 = vmatprep.subr.mxu0 0.0
        %557 = vmatpush1.xpose.msra.mxu0 0.0
        %558 = vmatprep.subr.mxu0 0.0
        %559 = vmatpush1.xpose.msra.mxu0 0.0
        %560 = vmatprep.subr.mxu0 0.0
        %561 = vmatpush1.xpose.msra.mxu0 0.0
        %562 = vmatprep.subr.mxu0 0.0
        %563 = vmatpush1.xpose.msra.mxu0 0.0
        %564 = vmatprep.mubr.f32.mxu0 0.0
        %565 = vmatmul.mubr.f32.gmra.mrb[0].mxu0 %v441
        %v566 = vpop.f32.mrb[0].mxu0
        %v567 = vadd.f32 0.0, %v566
        %v568 = vpop.f32.mrb[0].mxu0
        %569 = vmatprep.mubr.f32.mxu0 0.0
        %570 = vmatmul.mubr.f32.gmra.mrb[0].mxu0 %v444
        %v571 = vpop.f32.mrb[0].mxu0
        %v572 = vadd.f32 0.0, %v571
        %v573 = vpop.f32.mrb[0].mxu0
        %574 = vmatprep.mubr.f32.mxu0 0.0
        %575 = vmatmul.mubr.f32.gmra.mrb[0].mxu0 %v447
        %v576 = vpop.f32.mrb[0].mxu0
        %v577 = vadd.f32 0.0, %v576
        %v578 = vpop.f32.mrb[0].mxu0
        %579 = vmatprep.mubr.f32.mxu0 0.0
        %580 = vmatmul.mubr.f32.gmra.mrb[0].mxu0 %v450
        %v581 = vpop.f32.mrb[0].mxu0
        %v582 = vadd.f32 0.0, %v581
        %v583 = vpop.f32.mrb[0].mxu0
        %584 = vdwg.mxu0
        %v585 = vsel %vm240, %v432, 0.0
        %586 = vadd.xlane.f32.xlu0 %v585
        %v587 = vpop.xlane.xlu0 %586
        %v588 = vsel %vm240, %v433, 0.0
        %589 = vadd.xlane.f32.xlu0 %v588
        %v590 = vpop.xlane.xlu0 %589
        %v591 = vsel %vm240, %v434, 0.0
        %592 = vadd.xlane.f32.xlu0 %v591
        %v593 = vpop.xlane.xlu0 %592
        %v594 = vsel %vm240, %v435, 0.0
        %595 = vadd.xlane.f32.xlu0 %v594
        %v596 = vpop.xlane.xlu0 %595
        %v597 = vmul.f32 %v587, %v220
        %v598 = vmul.f32 %v590, %v221
        %v599 = vmul.f32 %v593, %v222
        %v600 = vmul.f32 %v596, %v223
        %v601 = vsub.f32 %v567, %v597
        %v602 = vsub.f32 %v572, %v598
        %v603 = vsub.f32 %v577, %v599
        %v604 = vsub.f32 %v582, %v600
        %v605 = vmul.f32 %v601, %v601
        %v606 = vmul.f32 %v602, %v602
        %v607 = vmul.f32 %v603, %v603
        %v608 = vmul.f32 %v604, %v604
        %609 = vadd.xlane.f32.xlu0 %v605
        %v610 = vpop.xlane.xlu0 %609
        %611 = vadd.xlane.f32.xlu0 %v606
        %v612 = vpop.xlane.xlu0 %611
        %613 = vadd.xlane.f32.xlu0 %v607
        %v614 = vpop.xlane.xlu0 %613
        %615 = vadd.xlane.f32.xlu0 %v608
        %v616 = vpop.xlane.xlu0 %615
        %v617 = vmax.f32 %v610, 1e-24
        %v618 = vmax.f32 %v612, 1e-24
        %v619 = vmax.f32 %v614, 1e-24
        %v620 = vmax.f32 %v616, 1e-24
        %v621 = vrsqrt.pop %v617
        %v622 = vrsqrt.pop %v618
        %v623 = vrsqrt.pop %v619
        %v624 = vrsqrt.pop %v620
        %v625 = vmul.f32 %v601, %v621
        %v626 = vmul.f32 %v602, %v622
        %v627 = vmul.f32 %v603, %v623
        %v628 = vmul.f32 %v604, %v624
        %v629 = vmul.f32 %v621, %v621
        %v630 = vmul.f32 %v622, %v622
        %v631 = vmul.f32 %v623, %v623
        %v632 = vmul.f32 %v624, %v624
        %v633 = vmul.f32 %v610, %v629
        %v634 = vmul.f32 %v612, %v630
        %v635 = vmul.f32 %v614, %v631
        %v636 = vmul.f32 %v616, %v632
        %v637 = vadd.f32 %v633, %v634
        %v638 = vadd.f32 %v637, %v635
        %v639 = vadd.f32 %v638, %v636
        %v640 = vrot.slane %v639, 4
        %v641 = vadd.f32 %v639, %v640
        %v642 = vrot.slane %v641, 2
        %v643 = vadd.f32 %v641, %v642
        %v644 = vrot.slane %v643, 1
        %v645 = vadd.f32 %v643, %v644
        %v646 = vmax.f32 %v645, 1e-24
        %v647 = vrsqrt.pop %v646
        %v648 = vmul.f32 %v625, %v647
        %v649 = vmul.f32 %v626, %v647
        %v650 = vmul.f32 %v627, %v647
        %v651 = vmul.f32 %v628, %v647
        %652 = vst [vmem:[%s190] sm:$0xff] %v648
        %653 = vst [vmem:[%s190 + $0x8] sm:$0xff] %v649
        %654 = vst [vmem:[%s190 + $0x10] sm:$0xff] %v650
        %655 = vst [vmem:[%s190 + $0x18] sm:$0xff] %v651
        %s656 = sand.u32 %s115, 1
        %s657 = scalar_lea.sflag [#allocation3], %s656
        %s658 = sand.u32 %s115, 1
        %s659 = smul.addr %s658, 32
        %s660 = scalar_lea.vmem [#allocation2], %s659
        // Predicated region
        $region37: #{tpu_custom_call.1} parent=35 // pred_check
          %p661 = pneg %p125
        $region38: #{tpu_custom_call.1} parent=35 // pred_check_branch
          %663 = sbr.rel (%p661) target = $region40
        $region39: #{tpu_custom_call.1} parent=35 // pred_region
          %s665 = ssub.s32 512, 512
          %666 = vsyncadd %s657, %s665
          %s667 = smul.addr %s18, 4
          %s668 = smul.addr %s667, 128
          %s669 = scalar_lea.hbm %s4, %s668
          %s670 = sshll.u32 %s660, 4
          %s671 = int_to_ptr.vmem [resolvable:$true] %s670
          %676 = dma.vmem_to_hbm [thread:$0]  %s671, 512, %s669, %s657, 128, 128, 8
        $region40: #{tpu_custom_call.1} parent=35 // pred_fallthru
          _
      $region36: #{tpu_custom_call.1} parent=5 // pred_fallthru
        _
      %p677 = scmp.le.s32.totalorder 2, %s13
      // Predicated region
      $region41: #{tpu_custom_call.1} parent=5 // pred_check
        %p678 = pneg %p677
      $region42: #{tpu_custom_call.1} parent=5 // pred_check_branch
        %680 = sbr.rel (%p678) target = $region44
      $region43: #{tpu_custom_call.1} parent=5 // pred_region
        %s681 = ssub.s32 %s13, 2
        // Predicated region
        $region45: #{tpu_custom_call.1} parent=43 // pred_check
          %p682 = pneg %p131
        $region46: #{tpu_custom_call.1} parent=43 // pred_check_branch
          %684 = sbr.rel (%p682) target = $region48
        $region47: #{tpu_custom_call.1} parent=43 // pred_region
          %s685 = sand.u32 %s116, 1
          %s686 = scalar_lea.sflag [#allocation3], %s685
          %s687 = sand.u32 %s116, 1
          %s688 = smul.addr %s687, 32
          %s689 = scalar_lea.vmem [#allocation2], %s688
          %690 = dma.done %s686, 512
        $region48: #{tpu_custom_call.1} parent=43 // pred_fallthru
          _
      $region44: #{tpu_custom_call.1} parent=5 // pred_fallthru
        _
    $region6: #{tpu_custom_call.1} parent=1 // loop_footer
      %s17 = sadd.s32 1, %s13
    $region7: #{tpu_custom_call.1} parent=1 // loop_footer_branch
      %12 = sbr.rel target = $region3
    $region8: #{tpu_custom_call.1} parent=1 // loop_exit
      _
    %691 = vsyncpa [#allocation3], 1
    %s692 = scalar_lea.sflag [#allocation3], 1
    %693 = vsyncpa %s692, 1

</llo_original>
